<compile_context>
chip_gen: v5e
topology: v5e:2x2
jax: 0.10.0
libtpu: 0.0.40
codegen_flags: <defaults>
</compile_context>

<pallas_src>
import functools
import math

import jax
import jax.numpy as jnp
from jax.experimental import pallas as pl
from jax.experimental.pallas import tpu as pltpu


# ------------------------------ fused kernel --------------------------------


def _fused_mha_kernel(x_ref, enc_ref, bias_ref, wq_ref, wkv_ref, wo_ref,
                      o_ref, stack_ref, *, n_heads, head_dim, compute_dtype):
    H, Dh = n_heads, head_dim
    hid = H * Dh
    Bt, Lq, q_dim = x_ref.shape
    _, Lkv, kv_dim = enc_ref.shape
    cd = compute_dtype
    f32 = jnp.float32
    exact = jnp.dtype(cd) == jnp.dtype(f32)

    # ---- fused projections: one tall matmul each for Q and (K|V) -----------
    # Weights arrive pre-cast to `cd` and W_q pre-scaled by 1/sqrt(Dh), so
    # there is no per-grid-step weight cast / scale here; f32 MXU accumulation.
    x2 = x_ref[...].reshape(Bt * Lq, q_dim).astype(cd)
    e2 = enc_ref[...].reshape(Bt * Lkv, kv_dim).astype(cd)
    q = jnp.dot(x2, wq_ref[...], preferred_element_type=f32)      # (Bt*Lq, hid)
    kv = jnp.dot(e2, wkv_ref[...], preferred_element_type=f32)    # (Bt*Lkv, 2*hid)
    k = kv[:, :hid]
    v = kv[:, hid:]

    bias = bias_ref[...]                                          # (Lq, Lkv) f32, pre-scaled

    # ---- per-head attention, batched over the Bt batch rows ----------------
    # TODO(synk): for long Lkv / large H switch to a kv-tiled online-softmax
    # (flash-style) accumulator instead of holding full (Lq, Lkv) scores.
    for h in range(H):
        cols = slice(h * Dh, (h + 1) * Dh)
        # TODO(synk): for production head_dim not a multiple of 128 these lane
        # slices are masked extracts; a head-major (H, in, Dh) weight layout
        # would make them free.
        q_h = q[:, cols].reshape(Bt, Lq, Dh).astype(cd)
        k_h = k[:, cols].reshape(Bt, Lkv, Dh).astype(cd)
        v_h = v[:, cols].reshape(Bt, Lkv, Dh).astype(cd)

        s = jnp.einsum("bqd,bkd->bqk", q_h, k_h,
                       preferred_element_type=f32)                # (Bt, Lq, Lkv)
        s = s + bias[None]
        s = s - jnp.max(s, axis=-1, keepdims=True)
        p = jnp.exp(s)
        inv_l = pl.reciprocal(jnp.sum(p, axis=-1, keepdims=True),
                              approx=not exact)
        o_h = jnp.einsum("bqk,bkd->bqd", p.astype(cd), v_h,
                         preferred_element_type=f32) * inv_l      # (Bt, Lq, Dh) f32

        # One contiguous (Lq, Dh) store per (batch row, head): row block
        # (b*H + h)*Lq of the flat head-major stack (sublane-aligned since
        # Lq % 8 == 0 here).
        for b in range(Bt):
            stack_ref[pl.ds((b * H + h) * Lq, Lq), :] = o_h[b]

    # ---- "missing transpose" + fused output projection ----------------------
    # The reference's row-major .view of [H, Lq, Dh] as [Lq, H*Dh] means
    # column block j of output row (b*Lq + i) is stack row (b*Lq + i)*H + j,
    # so ONE strided sublane read per column block j covers every batch row:
    #     out = sum_j stack[pl.ds(j, Bt*Lq, stride=H)] @ W_o[j*Dh:(j+1)*Dh]
    wo = wo_ref[...]                                              # (hid, q_dim), already cd
    out = jnp.zeros((Bt * Lq, q_dim), f32)
    for j in range(H):
        r_j = stack_ref[pl.ds(j, Bt * Lq, stride=H), :].astype(cd)
        out = out + jnp.dot(r_j, wo[j * Dh:(j + 1) * Dh, :],
                            preferred_element_type=f32)

    # TODO(synk): if production q_dim stays < 128 lanes, emit a lane-dense
    # flattened output block and reshape in the wrapper instead.
    o_ref[...] = out.reshape(Bt, Lq, q_dim).astype(o_ref.dtype)


# ------------------------------ call wrapper ---------------------------------


def _pick_batch_tile(batch, q_len, target_rows=128):
    """Batch elements folded into one grid step.

    Aim for >= target_rows LHS rows per projection matmul, but keep at least
    two grid steps (when batch >= 2) so both v7x TensorCores get work under
    dimension_semantics=("parallel",).
    """
    bt = max(1, min(batch, target_rows // max(q_len, 1)))
    if batch >= 2:
        bt = min(bt, batch // 2)
    bt = max(bt, 1)
    while batch % bt:
        bt -= 1
    return bt


def fused_masked_mha(x, enc, bias, w_q_t, w_kv_t, w_o_t, *, n_heads, head_dim,
                     compute_dtype=jnp.bfloat16, batch_tile=None):
    B, Lq, q_dim = x.shape
    _, Lkv, kv_dim = enc.shape
    hid = n_heads * head_dim
    assert w_q_t.shape == (q_dim, hid)
    assert w_kv_t.shape == (kv_dim, 2 * hid)
    assert w_o_t.shape == (hid, q_dim)
    cd = compute_dtype

    # One-time (per call, outside the kernel) weight prep: fold the softmax
    # scale into W_q and into the additive mask, cast weights to the compute
    # dtype so the kernel never re-casts / re-scales them per grid step.
    scale = 1.0 / math.sqrt(head_dim)
    w_q = (w_q_t * scale).astype(cd)
    w_kv = w_kv_t.astype(cd)
    w_o = w_o_t.astype(cd)
    bias = bias.astype(jnp.float32) * scale

    Bt = _pick_batch_tile(B, Lq) if batch_tile is None else batch_tile
    assert B % Bt == 0, (B, Bt)

    kernel = functools.partial(_fused_mha_kernel, n_heads=n_heads,
                               head_dim=head_dim, compute_dtype=cd)

    # TODO(synk): at production sizes (hid ~ 4K) the whole-weight BlockSpecs
    # must be tiled along their output dims and vmem_limit_bytes set so the
    # (double-buffered) weights fit v7x's 64 MiB VMEM.
    return pl.pallas_call(
        kernel,
        out_shape=jax.ShapeDtypeStruct((B, Lq, q_dim), x.dtype),
        grid=(B // Bt,),
        in_specs=[
            pl.BlockSpec((Bt, Lq, q_dim), lambda g: (g, 0, 0)),
            pl.BlockSpec((Bt, Lkv, kv_dim), lambda g: (g, 0, 0)),
            pl.BlockSpec((Lq, Lkv), lambda g: (0, 0)),
            pl.BlockSpec((q_dim, hid), lambda g: (0, 0)),
            pl.BlockSpec((kv_dim, 2 * hid), lambda g: (0, 0)),
            pl.BlockSpec((hid, q_dim), lambda g: (0, 0)),
        ],
        out_specs=pl.BlockSpec((Bt, Lq, q_dim), lambda g: (g, 0, 0)),
        scratch_shapes=[pltpu.VMEM((Bt * n_heads * Lq, head_dim), jnp.float32)],
        compiler_params=pltpu.CompilerParams(
            dimension_semantics=("parallel",)),
    )(x, enc, bias, w_q, w_kv, w_o)


# ----------------------------- module wrapper --------------------------------


class MaskedMultiHeadAttentionPallas:
    def __init__(self, q_dim, kv_dim, hidden_dim, n_heads, key):
        assert hidden_dim % n_heads == 0
        self.q_dim = q_dim
        self.kv_dim = kv_dim
        self.n_heads = n_heads
        self.hidden_dim = hidden_dim
        self.head_dim = hidden_dim // n_heads
        k1, k2, k3, k4 = jax.random.split(key, 4)
        # Weights stored pre-transposed (in_features, out_features) so the
        # kernel never transposes a weight tile; K and V merged into a single
        # (kv_dim, 2*hidden) weight so the KV projection is one matmul.
        self.w_q_t = 0.02 * jax.random.normal(k1, (q_dim, hidden_dim), jnp.float32)
        w_k_t = 0.02 * jax.random.normal(k2, (kv_dim, hidden_dim), jnp.float32)
        w_v_t = 0.02 * jax.random.normal(k3, (kv_dim, hidden_dim), jnp.float32)
        self.w_kv_t = jnp.concatenate([w_k_t, w_v_t], axis=1)
        self.w_o_t = 0.02 * jax.random.normal(k4, (hidden_dim, q_dim), jnp.float32)

    def __call__(self, hidden_states, encoder_hidden_states=None,
                 attention_mask=None, compute_dtype=jnp.bfloat16,
                 batch_tile=None):
        if encoder_hidden_states is None:
            encoder_hidden_states = hidden_states
        _, Lq, _ = hidden_states.shape
        _, Lkv, _ = encoder_hidden_states.shape
        bias = jnp.zeros((Lq, Lkv), dtype=hidden_states.dtype)
        if attention_mask is not None:
            # TODO(synk): the reference's bool-mask branch is broken
            # (masked_fill_ called with one argument raises); only additive
            # float masks are supported here.
            bias = bias + attention_mask.astype(bias.dtype)
        return fused_masked_mha(
            hidden_states, encoder_hidden_states, bias,
            self.w_q_t, self.w_kv_t, self.w_o_t,
            n_heads=self.n_heads, head_dim=self.head_dim,
            compute_dtype=compute_dtype, batch_tile=batch_tile)


# --------------------------- pure-JAX reference -------------------------------


def reference_forward(mod, x, enc, mask):
    B, Lq, _ = x.shape
    _, Lkv, _ = enc.shape
    H, Dh, hid = mod.n_heads, mod.head_dim, mod.hidden_dim
    q = x @ mod.w_q_t
    k = enc @ mod.w_kv_t[:, :hid]
    v = enc @ mod.w_kv_t[:, hid:]
    bias = jnp.zeros((Lq, Lkv), q.dtype)
    if mask is not None:
        bias = bias + mask
    q = q.reshape(B, Lq, H, Dh).transpose(0, 2, 1, 3)
    k = k.reshape(B, Lkv, H, Dh).transpose(0, 2, 1, 3)
    v = v.reshape(B, Lkv, H, Dh).transpose(0, 2, 1, 3)
    s = jnp.einsum("bhqd,bhkd->bhqk", q, k) + bias
    p = jax.nn.softmax(s / math.sqrt(Dh), axis=-1)
    o = jnp.einsum("bhqk,bhkd->bhqd", p, v)
    o = o.reshape(B, Lq, H * Dh)        # same missing-transpose semantics as torch .view
    return o @ mod.w_o_t


# ----------------------------------- main -------------------------------------


if __name__ == "__main__":
    key = jax.random.PRNGKey(0)
    kp, kx, ke = jax.random.split(key, 3)

    B, Lq, Lkv = 2, 8, 12
    q_dim, kv_dim, hidden_dim, n_heads = 32, 24, 32, 4

    mod = MaskedMultiHeadAttentionPallas(q_dim, kv_dim, hidden_dim, n_heads, kp)

    hidden_states = jax.random.normal(kx, (B, Lq, q_dim), jnp.float32)
    encoder_hidden_states = jax.random.normal(ke, (B, Lkv, kv_dim), jnp.float32)
    # Deterministic additive float mask: block out the last 4 kv positions.
    attention_mask = jnp.where(
        jnp.arange(Lkv)[None, :] >= Lkv - 4, -1e9, 0.0
    ).astype(jnp.float32) * jnp.ones((Lq, 1), jnp.float32)

    ref = reference_forward(mod, hidden_states, encoder_hidden_states, attention_mask)

    # Exact-math path (f32 operands) — tight check against the reference.
    out_f32 = mod(hidden_states, encoder_hidden_states, attention_mask,
                  compute_dtype=jnp.float32)
    out_f32 = jax.block_until_ready(out_f32)
    assert out_f32.shape == (B, Lq, q_dim)
    assert jnp.allclose(out_f32, ref, atol=1e-5, rtol=1e-5), (
        float(jnp.max(jnp.abs(out_f32 - ref))))

    # Fast path: bf16 MXU operands, f32 accumulation, f32 softmax — loose check.
    out_bf16 = mod(hidden_states, encoder_hidden_states, attention_mask,
                   compute_dtype=jnp.bfloat16)
    out_bf16 = jax.block_until_ready(out_bf16)
    assert out_bf16.shape == (B, Lq, q_dim)
    assert jnp.allclose(out_bf16, ref, atol=2e-2, rtol=2e-2), (
        float(jnp.max(jnp.abs(out_bf16 - ref))))

    print("KERNEL_OK")
</pallas_src>

<mosaic_0001>
module attributes {stable_mosaic.version = 11 : i64} {
  func.func @_fused_mha_kernel(%arg0: i32, %arg1: memref<1x8x32xf32, #tpu.memory_space<vmem>>, %arg2: memref<1x12x24xf32, #tpu.memory_space<vmem>>, %arg3: memref<8x12xf32, #tpu.memory_space<vmem>>, %arg4: memref<32x32xf32, #tpu.memory_space<vmem>>, %arg5: memref<24x64xf32, #tpu.memory_space<vmem>>, %arg6: memref<32x32xf32, #tpu.memory_space<vmem>>, %arg7: memref<1x8x32xf32, #tpu.memory_space<vmem>>, %arg8: memref<32x8xf32, #tpu.memory_space<vmem>>) attributes {dimension_semantics = [#tpu.dimension_semantics<parallel>], iteration_bounds = array<i64: 2>, scalar_prefetch = 0 : i64, scratch_operands = 1 : i64, tpu.core_type = #tpu.core_type<tc>, window_params = [{transform_indices = @transform_0, window_bounds = array<i64: 1, 8, 32>}, {transform_indices = @transform_1, window_bounds = array<i64: 1, 12, 24>}, {pipeline_mode = #tpu.pipeline_mode<synchronous>, transform_indices = @transform_2, window_bounds = array<i64: 8, 12>}, {pipeline_mode = #tpu.pipeline_mode<synchronous>, transform_indices = @transform_3, window_bounds = array<i64: 32, 32>}, {pipeline_mode = #tpu.pipeline_mode<synchronous>, transform_indices = @transform_4, window_bounds = array<i64: 24, 64>}, {pipeline_mode = #tpu.pipeline_mode<synchronous>, transform_indices = @transform_5, window_bounds = array<i64: 32, 32>}, {transform_indices = @transform_6, window_bounds = array<i64: 1, 8, 32>}]} {
    %c0 = arith.constant 0 : index
    %c0_0 = arith.constant 0 : index
    %c0_1 = arith.constant 0 : index
    %0 = vector.load %arg1[%c0, %c0_0, %c0_1] : memref<1x8x32xf32, #tpu.memory_space<vmem>>, vector<1x8x32xf32>
    %1 = vector.shape_cast %0 : vector<1x8x32xf32> to vector<8x32xf32>
    %c0_2 = arith.constant 0 : index
    %c0_3 = arith.constant 0 : index
    %c0_4 = arith.constant 0 : index
    %2 = vector.load %arg2[%c0_2, %c0_3, %c0_4] : memref<1x12x24xf32, #tpu.memory_space<vmem>>, vector<1x12x24xf32>
    %3 = vector.shape_cast %2 : vector<1x12x24xf32> to vector<12x24xf32>
    %c0_5 = arith.constant 0 : index
    %c0_6 = arith.constant 0 : index
    %4 = vector.load %arg4[%c0_5, %c0_6] : memref<32x32xf32, #tpu.memory_space<vmem>>, vector<32x32xf32>
    %cst = arith.constant dense<0.000000e+00> : vector<8x32xf32>
    %5 = tpu.matmul %1, %4, %cst {dimension_numbers = #tpu.dot_dimension_numbers<[1], [0], [0], [1], [0, 0, 1, 1], [], []>} : vector<8x32xf32>, vector<32x32xf32>, vector<8x32xf32> -> vector<8x32xf32>
    %c0_7 = arith.constant 0 : index
    %c0_8 = arith.constant 0 : index
    %6 = vector.load %arg5[%c0_7, %c0_8] : memref<24x64xf32, #tpu.memory_space<vmem>>, vector<24x64xf32>
    %cst_9 = arith.constant dense<0.000000e+00> : vector<12x64xf32>
    %7 = tpu.matmul %3, %6, %cst_9 {dimension_numbers = #tpu.dot_dimension_numbers<[1], [0], [0], [1], [0, 0, 1, 1], [], []>} : vector<12x24xf32>, vector<24x64xf32>, vector<12x64xf32> -> vector<12x64xf32>
    %8 = vector.extract_strided_slice %7 {offsets = [0, 0], sizes = [12, 32], strides = [1, 1]} : vector<12x64xf32> to vector<12x32xf32>
    %9 = vector.extract_strided_slice %7 {offsets = [0, 32], sizes = [12, 32], strides = [1, 1]} : vector<12x64xf32> to vector<12x32xf32>
    %c0_10 = arith.constant 0 : index
    %c0_11 = arith.constant 0 : index
    %10 = vector.load %arg3[%c0_10, %c0_11] : memref<8x12xf32, #tpu.memory_space<vmem>>, vector<8x12xf32>
    %11 = vector.extract_strided_slice %5 {offsets = [0, 0], sizes = [8, 8], strides = [1, 1]} : vector<8x32xf32> to vector<8x8xf32>
    %12 = vector.shape_cast %11 : vector<8x8xf32> to vector<1x8x8xf32>
    %13 = vector.extract_strided_slice %8 {offsets = [0, 0], sizes = [12, 8], strides = [1, 1]} : vector<12x32xf32> to vector<12x8xf32>
    %14 = vector.shape_cast %13 : vector<12x8xf32> to vector<1x12x8xf32>
    %15 = vector.extract_strided_slice %9 {offsets = [0, 0], sizes = [12, 8], strides = [1, 1]} : vector<12x32xf32> to vector<12x8xf32>
    %16 = vector.shape_cast %15 : vector<12x8xf32> to vector<1x12x8xf32>
    "tpu.trace_start"() <{level = 10 : i32, message = "bqd,bkd->bqk"}> : () -> ()
    %cst_12 = arith.constant dense<0.000000e+00> : vector<1x8x12xf32>
    %17 = tpu.matmul %12, %14, %cst_12 {dimension_numbers = #tpu.dot_dimension_numbers<[2], [2], [1], [1], [0, 0, 0, 1, 1, 1], [0], [0]>} : vector<1x8x8xf32>, vector<1x12x8xf32>, vector<1x8x12xf32> -> vector<1x8x12xf32>
    "tpu.trace_stop"() : () -> ()
    %18 = vector.shape_cast %10 : vector<8x12xf32> to vector<1x8x12xf32>
    %19 = arith.addf %17, %18 : vector<1x8x12xf32>
    %cst_13 = arith.constant dense<0xFF800000> : vector<1x8xf32>
    %20 = vector.multi_reduction <maximumf>, %19, %cst_13 [2] : vector<1x8x12xf32> to vector<1x8xf32>
    %21 = vector.shape_cast %20 : vector<1x8xf32> to vector<1x8x1xf32>
    %22 = vector.broadcast %21 : vector<1x8x1xf32> to vector<1x8x12xf32>
    %23 = arith.subf %19, %22 : vector<1x8x12xf32>
    %24 = math.exp %23 : vector<1x8x12xf32>
    %cst_14 = arith.constant dense<0.000000e+00> : vector<1x8xf32>
    %25 = vector.multi_reduction <add>, %24, %cst_14 [2] : vector<1x8x12xf32> to vector<1x8xf32>
    %26 = vector.shape_cast %25 : vector<1x8xf32> to vector<1x8x1xf32>
    %27 = tpu.reciprocal %26 : vector<1x8x1xf32> -> vector<1x8x1xf32>
    "tpu.trace_start"() <{level = 10 : i32, message = "bqk,bkd->bqd"}> : () -> ()
    %cst_15 = arith.constant dense<0.000000e+00> : vector<1x8x8xf32>
    %28 = tpu.matmul %24, %16, %cst_15 {dimension_numbers = #tpu.dot_dimension_numbers<[2], [1], [1], [2], [0, 0, 0, 1, 1, 2], [0], [0]>} : vector<1x8x12xf32>, vector<1x12x8xf32>, vector<1x8x8xf32> -> vector<1x8x8xf32>
    "tpu.trace_stop"() : () -> ()
    %29 = vector.broadcast %27 : vector<1x8x1xf32> to vector<1x8x8xf32>
    %30 = arith.mulf %28, %29 : vector<1x8x8xf32>
    %31 = vector.shape_cast %30 : vector<1x8x8xf32> to vector<8x8xf32>
    %c0_16 = arith.constant 0 : index
    %c0_17 = arith.constant 0 : index
    %32 = vector.load %arg8[%c0_16, %c0_17] : memref<32x8xf32, #tpu.memory_space<vmem>>, vector<8x8xf32>
    tpu.vector_store %arg8[%c0_16, %c0_17], %31 {strides = array<i32>} : memref<32x8xf32, #tpu.memory_space<vmem>>, vector<8x8xf32>,
    %33 = vector.extract_strided_slice %5 {offsets = [0, 8], sizes = [8, 8], strides = [1, 1]} : vector<8x32xf32> to vector<8x8xf32>
    %34 = vector.shape_cast %33 : vector<8x8xf32> to vector<1x8x8xf32>
    %35 = vector.extract_strided_slice %8 {offsets = [0, 8], sizes = [12, 8], strides = [1, 1]} : vector<12x32xf32> to vector<12x8xf32>
    %36 = vector.shape_cast %35 : vector<12x8xf32> to vector<1x12x8xf32>
    %37 = vector.extract_strided_slice %9 {offsets = [0, 8], sizes = [12, 8], strides = [1, 1]} : vector<12x32xf32> to vector<12x8xf32>
    %38 = vector.shape_cast %37 : vector<12x8xf32> to vector<1x12x8xf32>
    "tpu.trace_start"() <{level = 10 : i32, message = "bqd,bkd->bqk"}> : () -> ()
    %cst_18 = arith.constant dense<0.000000e+00> : vector<1x8x12xf32>
    %39 = tpu.matmul %34, %36, %cst_18 {dimension_numbers = #tpu.dot_dimension_numbers<[2], [2], [1], [1], [0, 0, 0, 1, 1, 1], [0], [0]>} : vector<1x8x8xf32>, vector<1x12x8xf32>, vector<1x8x12xf32> -> vector<1x8x12xf32>
    "tpu.trace_stop"() : () -> ()
    %40 = vector.shape_cast %10 : vector<8x12xf32> to vector<1x8x12xf32>
    %41 = arith.addf %39, %40 : vector<1x8x12xf32>
    %cst_19 = arith.constant dense<0xFF800000> : vector<1x8xf32>
    %42 = vector.multi_reduction <maximumf>, %41, %cst_19 [2] : vector<1x8x12xf32> to vector<1x8xf32>
    %43 = vector.shape_cast %42 : vector<1x8xf32> to vector<1x8x1xf32>
    %44 = vector.broadcast %43 : vector<1x8x1xf32> to vector<1x8x12xf32>
    %45 = arith.subf %41, %44 : vector<1x8x12xf32>
    %46 = math.exp %45 : vector<1x8x12xf32>
    %cst_20 = arith.constant dense<0.000000e+00> : vector<1x8xf32>
    %47 = vector.multi_reduction <add>, %46, %cst_20 [2] : vector<1x8x12xf32> to vector<1x8xf32>
    %48 = vector.shape_cast %47 : vector<1x8xf32> to vector<1x8x1xf32>
    %49 = tpu.reciprocal %48 : vector<1x8x1xf32> -> vector<1x8x1xf32>
    "tpu.trace_start"() <{level = 10 : i32, message = "bqk,bkd->bqd"}> : () -> ()
    %cst_21 = arith.constant dense<0.000000e+00> : vector<1x8x8xf32>
    %50 = tpu.matmul %46, %38, %cst_21 {dimension_numbers = #tpu.dot_dimension_numbers<[2], [1], [1], [2], [0, 0, 0, 1, 1, 2], [0], [0]>} : vector<1x8x12xf32>, vector<1x12x8xf32>, vector<1x8x8xf32> -> vector<1x8x8xf32>
    "tpu.trace_stop"() : () -> ()
    %51 = vector.broadcast %49 : vector<1x8x1xf32> to vector<1x8x8xf32>
    %52 = arith.mulf %50, %51 : vector<1x8x8xf32>
    %53 = vector.shape_cast %52 : vector<1x8x8xf32> to vector<8x8xf32>
    %c8 = arith.constant 8 : index
    %c0_22 = arith.constant 0 : index
    %54 = vector.load %arg8[%c8, %c0_22] : memref<32x8xf32, #tpu.memory_space<vmem>>, vector<8x8xf32>
    tpu.vector_store %arg8[%c8, %c0_22], %53 {strides = array<i32>} : memref<32x8xf32, #tpu.memory_space<vmem>>, vector<8x8xf32>,
    %55 = vector.extract_strided_slice %5 {offsets = [0, 16], sizes = [8, 8], strides = [1, 1]} : vector<8x32xf32> to vector<8x8xf32>
    %56 = vector.shape_cast %55 : vector<8x8xf32> to vector<1x8x8xf32>
    %57 = vector.extract_strided_slice %8 {offsets = [0, 16], sizes = [12, 8], strides = [1, 1]} : vector<12x32xf32> to vector<12x8xf32>
    %58 = vector.shape_cast %57 : vector<12x8xf32> to vector<1x12x8xf32>
    %59 = vector.extract_strided_slice %9 {offsets = [0, 16], sizes = [12, 8], strides = [1, 1]} : vector<12x32xf32> to vector<12x8xf32>
    %60 = vector.shape_cast %59 : vector<12x8xf32> to vector<1x12x8xf32>
    "tpu.trace_start"() <{level = 10 : i32, message = "bqd,bkd->bqk"}> : () -> ()
    %cst_23 = arith.constant dense<0.000000e+00> : vector<1x8x12xf32>
    %61 = tpu.matmul %56, %58, %cst_23 {dimension_numbers = #tpu.dot_dimension_numbers<[2], [2], [1], [1], [0, 0, 0, 1, 1, 1], [0], [0]>} : vector<1x8x8xf32>, vector<1x12x8xf32>, vector<1x8x12xf32> -> vector<1x8x12xf32>
    "tpu.trace_stop"() : () -> ()
    %62 = vector.shape_cast %10 : vector<8x12xf32> to vector<1x8x12xf32>
    %63 = arith.addf %61, %62 : vector<1x8x12xf32>
    %cst_24 = arith.constant dense<0xFF800000> : vector<1x8xf32>
    %64 = vector.multi_reduction <maximumf>, %63, %cst_24 [2] : vector<1x8x12xf32> to vector<1x8xf32>
    %65 = vector.shape_cast %64 : vector<1x8xf32> to vector<1x8x1xf32>
    %66 = vector.broadcast %65 : vector<1x8x1xf32> to vector<1x8x12xf32>
    %67 = arith.subf %63, %66 : vector<1x8x12xf32>
    %68 = math.exp %67 : vector<1x8x12xf32>
    %cst_25 = arith.constant dense<0.000000e+00> : vector<1x8xf32>
    %69 = vector.multi_reduction <add>, %68, %cst_25 [2] : vector<1x8x12xf32> to vector<1x8xf32>
    %70 = vector.shape_cast %69 : vector<1x8xf32> to vector<1x8x1xf32>
    %71 = tpu.reciprocal %70 : vector<1x8x1xf32> -> vector<1x8x1xf32>
    "tpu.trace_start"() <{level = 10 : i32, message = "bqk,bkd->bqd"}> : () -> ()
    %cst_26 = arith.constant dense<0.000000e+00> : vector<1x8x8xf32>
    %72 = tpu.matmul %68, %60, %cst_26 {dimension_numbers = #tpu.dot_dimension_numbers<[2], [1], [1], [2], [0, 0, 0, 1, 1, 2], [0], [0]>} : vector<1x8x12xf32>, vector<1x12x8xf32>, vector<1x8x8xf32> -> vector<1x8x8xf32>
    "tpu.trace_stop"() : () -> ()
    %73 = vector.broadcast %71 : vector<1x8x1xf32> to vector<1x8x8xf32>
    %74 = arith.mulf %72, %73 : vector<1x8x8xf32>
    %75 = vector.shape_cast %74 : vector<1x8x8xf32> to vector<8x8xf32>
    %c16 = arith.constant 16 : index
    %c0_27 = arith.constant 0 : index
    %76 = vector.load %arg8[%c16, %c0_27] : memref<32x8xf32, #tpu.memory_space<vmem>>, vector<8x8xf32>
    tpu.vector_store %arg8[%c16, %c0_27], %75 {strides = array<i32>} : memref<32x8xf32, #tpu.memory_space<vmem>>, vector<8x8xf32>,
    %77 = vector.extract_strided_slice %5 {offsets = [0, 24], sizes = [8, 8], strides = [1, 1]} : vector<8x32xf32> to vector<8x8xf32>
    %78 = vector.shape_cast %77 : vector<8x8xf32> to vector<1x8x8xf32>
    %79 = vector.extract_strided_slice %8 {offsets = [0, 24], sizes = [12, 8], strides = [1, 1]} : vector<12x32xf32> to vector<12x8xf32>
    %80 = vector.shape_cast %79 : vector<12x8xf32> to vector<1x12x8xf32>
    %81 = vector.extract_strided_slice %9 {offsets = [0, 24], sizes = [12, 8], strides = [1, 1]} : vector<12x32xf32> to vector<12x8xf32>
    %82 = vector.shape_cast %81 : vector<12x8xf32> to vector<1x12x8xf32>
    "tpu.trace_start"() <{level = 10 : i32, message = "bqd,bkd->bqk"}> : () -> ()
    %cst_28 = arith.constant dense<0.000000e+00> : vector<1x8x12xf32>
    %83 = tpu.matmul %78, %80, %cst_28 {dimension_numbers = #tpu.dot_dimension_numbers<[2], [2], [1], [1], [0, 0, 0, 1, 1, 1], [0], [0]>} : vector<1x8x8xf32>, vector<1x12x8xf32>, vector<1x8x12xf32> -> vector<1x8x12xf32>
    "tpu.trace_stop"() : () -> ()
    %84 = vector.shape_cast %10 : vector<8x12xf32> to vector<1x8x12xf32>
    %85 = arith.addf %83, %84 : vector<1x8x12xf32>
    %cst_29 = arith.constant dense<0xFF800000> : vector<1x8xf32>
    %86 = vector.multi_reduction <maximumf>, %85, %cst_29 [2] : vector<1x8x12xf32> to vector<1x8xf32>
    %87 = vector.shape_cast %86 : vector<1x8xf32> to vector<1x8x1xf32>
    %88 = vector.broadcast %87 : vector<1x8x1xf32> to vector<1x8x12xf32>
    %89 = arith.subf %85, %88 : vector<1x8x12xf32>
    %90 = math.exp %89 : vector<1x8x12xf32>
    %cst_30 = arith.constant dense<0.000000e+00> : vector<1x8xf32>
    %91 = vector.multi_reduction <add>, %90, %cst_30 [2] : vector<1x8x12xf32> to vector<1x8xf32>
    %92 = vector.shape_cast %91 : vector<1x8xf32> to vector<1x8x1xf32>
    %93 = tpu.reciprocal %92 : vector<1x8x1xf32> -> vector<1x8x1xf32>
    "tpu.trace_start"() <{level = 10 : i32, message = "bqk,bkd->bqd"}> : () -> ()
    %cst_31 = arith.constant dense<0.000000e+00> : vector<1x8x8xf32>
    %94 = tpu.matmul %90, %82, %cst_31 {dimension_numbers = #tpu.dot_dimension_numbers<[2], [1], [1], [2], [0, 0, 0, 1, 1, 2], [0], [0]>} : vector<1x8x12xf32>, vector<1x12x8xf32>, vector<1x8x8xf32> -> vector<1x8x8xf32>
    "tpu.trace_stop"() : () -> ()
    %95 = vector.broadcast %93 : vector<1x8x1xf32> to vector<1x8x8xf32>
    %96 = arith.mulf %94, %95 : vector<1x8x8xf32>
    %97 = vector.shape_cast %96 : vector<1x8x8xf32> to vector<8x8xf32>
    %c24 = arith.constant 24 : index
    %c0_32 = arith.constant 0 : index
    %98 = vector.load %arg8[%c24, %c0_32] : memref<32x8xf32, #tpu.memory_space<vmem>>, vector<8x8xf32>
    tpu.vector_store %arg8[%c24, %c0_32], %97 {strides = array<i32>} : memref<32x8xf32, #tpu.memory_space<vmem>>, vector<8x8xf32>,
    %c0_33 = arith.constant 0 : index
    %c0_34 = arith.constant 0 : index
    %99 = vector.load %arg6[%c0_33, %c0_34] : memref<32x32xf32, #tpu.memory_space<vmem>>, vector<32x32xf32>
    %cst_35 = arith.constant 0.000000e+00 : f32
    %100 = vector.broadcast %cst_35 : f32 to vector<8x32xf32>
    %c0_36 = arith.constant 0 : index
    %c0_37 = arith.constant 0 : index
    %101 = tpu.strided_load %arg8[%c0_36, %c0_37] {strides = array<i32: 4, 1>} : memref<32x8xf32, #tpu.memory_space<vmem>>, vector<8x8xf32>
    %102 = vector.extract_strided_slice %99 {offsets = [0, 0], sizes = [8, 32], strides = [1, 1]} : vector<32x32xf32> to vector<8x32xf32>
    %cst_38 = arith.constant dense<0.000000e+00> : vector<8x32xf32>
    %103 = tpu.matmul %101, %102, %cst_38 {dimension_numbers = #tpu.dot_dimension_numbers<[1], [0], [0], [1], [0, 0, 1, 1], [], []>} : vector<8x8xf32>, vector<8x32xf32>, vector<8x32xf32> -> vector<8x32xf32>
    %104 = arith.addf %100, %103 : vector<8x32xf32>
    %c1 = arith.constant 1 : index
    %c0_39 = arith.constant 0 : index
    %105 = tpu.strided_load %arg8[%c1, %c0_39] {strides = array<i32: 4, 1>} : memref<32x8xf32, #tpu.memory_space<vmem>>, vector<8x8xf32>
    %106 = vector.extract_strided_slice %99 {offsets = [8, 0], sizes = [8, 32], strides = [1, 1]} : vector<32x32xf32> to vector<8x32xf32>
    %cst_40 = arith.constant dense<0.000000e+00> : vector<8x32xf32>
    %107 = tpu.matmul %105, %106, %cst_40 {dimension_numbers = #tpu.dot_dimension_numbers<[1], [0], [0], [1], [0, 0, 1, 1], [], []>} : vector<8x8xf32>, vector<8x32xf32>, vector<8x32xf32> -> vector<8x32xf32>
    %108 = arith.addf %104, %107 : vector<8x32xf32>
    %c2 = arith.constant 2 : index
    %c0_41 = arith.constant 0 : index
    %109 = tpu.strided_load %arg8[%c2, %c0_41] {strides = array<i32: 4, 1>} : memref<32x8xf32, #tpu.memory_space<vmem>>, vector<8x8xf32>
    %110 = vector.extract_strided_slice %99 {offsets = [16, 0], sizes = [8, 32], strides = [1, 1]} : vector<32x32xf32> to vector<8x32xf32>
    %cst_42 = arith.constant dense<0.000000e+00> : vector<8x32xf32>
    %111 = tpu.matmul %109, %110, %cst_42 {dimension_numbers = #tpu.dot_dimension_numbers<[1], [0], [0], [1], [0, 0, 1, 1], [], []>} : vector<8x8xf32>, vector<8x32xf32>, vector<8x32xf32> -> vector<8x32xf32>
    %112 = arith.addf %108, %111 : vector<8x32xf32>
    %c3 = arith.constant 3 : index
    %c0_43 = arith.constant 0 : index
    %113 = tpu.strided_load %arg8[%c3, %c0_43] {strides = array<i32: 4, 1>} : memref<32x8xf32, #tpu.memory_space<vmem>>, vector<8x8xf32>
    %114 = vector.extract_strided_slice %99 {offsets = [24, 0], sizes = [8, 32], strides = [1, 1]} : vector<32x32xf32> to vector<8x32xf32>
    %cst_44 = arith.constant dense<0.000000e+00> : vector<8x32xf32>
    %115 = tpu.matmul %113, %114, %cst_44 {dimension_numbers = #tpu.dot_dimension_numbers<[1], [0], [0], [1], [0, 0, 1, 1], [], []>} : vector<8x8xf32>, vector<8x32xf32>, vector<8x32xf32> -> vector<8x32xf32>
    %116 = arith.addf %112, %115 : vector<8x32xf32>
    %117 = vector.shape_cast %116 : vector<8x32xf32> to vector<1x8x32xf32>
    %c0_45 = arith.constant 0 : index
    %c0_46 = arith.constant 0 : index
    %c0_47 = arith.constant 0 : index
    %118 = vector.load %arg7[%c0_45, %c0_46, %c0_47] : memref<1x8x32xf32, #tpu.memory_space<vmem>>, vector<1x8x32xf32>
    tpu.vector_store %arg7[%c0_45, %c0_46, %c0_47], %117 {strides = array<i32>} : memref<1x8x32xf32, #tpu.memory_space<vmem>>, vector<1x8x32xf32>,
    return
  }
  func.func @transform_0(%arg0: i32) -> (i32, i32, i32) {
    %c0_i32 = arith.constant 0 : i32
    %c0_i32_0 = arith.constant 0 : i32
    %c0_i32_1 = arith.constant 0 : i32
    return %arg0, %c0_i32, %c0_i32_0 : i32, i32, i32
  }
  func.func @transform_1(%arg0: i32) -> (i32, i32, i32) {
    %c0_i32 = arith.constant 0 : i32
    %c0_i32_0 = arith.constant 0 : i32
    %c0_i32_1 = arith.constant 0 : i32
    return %arg0, %c0_i32, %c0_i32_0 : i32, i32, i32
  }
  func.func @transform_2(%arg0: i32) -> (i32, i32) {
    %c0_i32 = arith.constant 0 : i32
    %c0_i32_0 = arith.constant 0 : i32
    %c0_i32_1 = arith.constant 0 : i32
    return %c0_i32, %c0_i32_0 : i32, i32
  }
  func.func @transform_3(%arg0: i32) -> (i32, i32) {
    %c0_i32 = arith.constant 0 : i32
    %c0_i32_0 = arith.constant 0 : i32
    %c0_i32_1 = arith.constant 0 : i32
    return %c0_i32, %c0_i32_0 : i32, i32
  }
  func.func @transform_4(%arg0: i32) -> (i32, i32) {
    %c0_i32 = arith.constant 0 : i32
    %c0_i32_0 = arith.constant 0 : i32
    %c0_i32_1 = arith.constant 0 : i32
    return %c0_i32, %c0_i32_0 : i32, i32
  }
  func.func @transform_5(%arg0: i32) -> (i32, i32) {
    %c0_i32 = arith.constant 0 : i32
    %c0_i32_0 = arith.constant 0 : i32
    %c0_i32_1 = arith.constant 0 : i32
    return %c0_i32, %c0_i32_0 : i32, i32
  }
  func.func @transform_6(%arg0: i32) -> (i32, i32, i32) {
    %c0_i32 = arith.constant 0 : i32
    %c0_i32_0 = arith.constant 0 : i32
    %c0_i32_1 = arith.constant 0 : i32
    return %arg0, %c0_i32, %c0_i32_0 : i32, i32, i32
  }
}

</mosaic_0001>

<llo_original>
// kernel: tpu_custom_call.1
$region0: #{tpu_custom_call.1}
  #allocation0 [shape = 'u32[]', space=smem, size = 0x4, offset = 0x4, fixed_abs, tag = 'smem constant byte address 0x4 - core index']
  #allocation1 [shape = 'u32[72,128]{1,0:T(1,128)}', space=vmem, size = 0x9000, scoped, tag = 'internal scratch']
  #allocation2 [shape = 'f32[32,8]{1,0:T(8,128)}', space=vmem, size = 0x4000, scoped, tag = 'scratch operand']
  %s0 = inlined_call_operand.hbm [shape: f32[2,8,32], index: 0, kind: input, shape index: {}]
  %s1 = inlined_call_operand.vmem [shape: f32[2,12,24], index: 1, kind: input, shape index: {}]
  %s2 = inlined_call_operand.hbm [shape: f32[8,12], index: 2, kind: input, shape index: {}]
  %s3 = inlined_call_operand.vmem [shape: f32[32,32], index: 3, kind: input, shape index: {}]
  %s4 = inlined_call_operand.vmem [shape: f32[24,64], index: 4, kind: input, shape index: {}]
  %s5 = inlined_call_operand.hbm [shape: f32[32,32], index: 5, kind: input, shape index: {}]
  %s6 = inlined_call_operand.hbm [shape: f32[2,8,32], index: 6, kind: output, shape index: {}]
  %s7 = sld [smem:[#allocation0]]
  $region69: #{tpu_custom_call.1} parent=0
    _
  %s9 = ssub.s32 1, %s7
  %s10 = scalar_select 0, %s9, %s7
  $region1: #{tpu_custom_call.1} parent=0
    #allocation3 [shape = 'u8[8192]{0}', space=vmem, size = 0x2000, scoped, tag = 'input window, operand 0']
    #allocation4 [shape = 's32[2]{0}', space=sflag, size = 0x8, scoped, tag = 'scoped memory for tpu_custom_call.1']
    #allocation5 [shape = 's32[2]{0}', space=sflag, size = 0x8, scoped, tag = 'scoped memory for tpu_custom_call.1']
    #allocation6 [shape = 'u8[4096]{0}', space=vmem, size = 0x1000, scoped, tag = 'input window, operand 2, single buffered']
    #allocation7 [shape = 's32[1]{0}', space=sflag, size = 0x4, scoped, tag = 'scoped memory for tpu_custom_call.1']
    #allocation8 [shape = 'u8[16384]{0}', space=vmem, size = 0x4000, scoped, tag = 'input window, operand 5, single buffered']
    #allocation9 [shape = 'u8[8192]{0}', space=vmem, size = 0x2000, scoped, tag = 'output window, operand 0']
    %11 = vsyncpa [#allocation4], 0
    %s12 = scalar_lea.sflag [#allocation4], 1
    %13 = vsyncpa %s12, 0
    %14 = vsyncpa [#allocation7], 0
    %15 = vsyncpa [#allocation5], 0
    %s16 = scalar_lea.sflag [#allocation5], 1
    %17 = vsyncpa %s16, 0
    loop: start=0, step=1, limit=4
    $region2: #{tpu_custom_call.1} parent=1 // loop_pre_header
      _
    $region3: #{tpu_custom_call.1} parent=1 // loop_header
      %s19 = sphi 0, %s23
      %p20 = scmp.ge.s32.totalorder %s19, 4
      %s29 = sphi 0, %s31
      %s32 = sphi 0, %s29
      %s33 = sphi 0, %s32
      %s49 = sphi 0, %s33
      %s55 = sphi 0, %s57
      %s58 = sphi 0, %s55
      %s59 = sphi 0, %s58
      %s75 = sphi 0, %s59
      %s79 = sphi 0, %s79
      %s81 = sphi 0, %s79
      %s82 = sphi 0, %s81
      %s96 = sphi 0, %s82
      %s100 = sphi 0, %s100
      %s102 = sphi 0, %s100
      %s103 = sphi 0, %s102
      %s117 = sphi 0, %s103
      %s121 = sphi 0, %s121
      %s123 = sphi 0, %s121
      %s124 = sphi 0, %s123
      %s138 = sphi 0, %s124
      %s142 = sphi 0, %s142
      %s144 = sphi 0, %s142
      %s145 = sphi 0, %s144
      %s159 = sphi 0, %s145
      %s165 = sphi 0, %s167
      %s168 = sphi 0, %s165
      %s169 = sphi 0, %s168
      %s185 = sphi 0, %s169
    $region4: #{tpu_custom_call.1} parent=1 // loop_header_branch
      %22 = sbr.rel (%p20) target = $region8
    $region5: #{tpu_custom_call.1} parent=1 // loop_body
      %s24 = ssub.s32 %s19, 1
      %s25 = ssub.s32 %s19, 2
      %s26 = sadd.s32 %s19, 1
      %s27 = ssub.s32 %s19, %s26
      %p28 = scmp.eq.s32.totalorder %s27, 0
      %s30 = sadd.s32 %s29, 1
      %s31 = scalar_select %p28, %s29, %s30
      %p34 = pneg %p28
      %p35 = scmp.eq.s32.totalorder %s19, 1
      %p36 = por %p34, %p35
      %p37 = scmp.ne.s32.totalorder %s29, %s32
      %p38 = scmp.eq.s32.totalorder %s19, 0
      %p39 = por %p37, %p38
      %p40 = scmp.ne.s32.totalorder %s29, %s32
      %p41 = scmp.eq.s32.totalorder %s24, 1
      %p42 = por %p40, %p41
      %p43 = scmp.ne.s32.totalorder %s32, %s33
      %p44 = scmp.eq.s32.totalorder %s24, 0
      %p45 = por %p43, %p44
      %p46 = scmp.ne.s32.totalorder %s32, %s33
      %p47 = scmp.eq.s32.totalorder %s25, 1
      %p48 = por %p46, %p47
      %p50 = scmp.ne.s32.totalorder %s33, %s49
      %p51 = scmp.eq.s32.totalorder %s25, 0
      %p52 = por %p50, %p51
      %s53 = ssub.s32 %s19, %s26
      %p54 = scmp.eq.s32.totalorder %s53, 0
      %s56 = sadd.s32 %s55, 1
      %s57 = scalar_select %p54, %s55, %s56
      %p60 = pneg %p54
      %p61 = scmp.eq.s32.totalorder %s19, 1
      %p62 = por %p60, %p61
      %p63 = scmp.ne.s32.totalorder %s55, %s58
      %p64 = scmp.eq.s32.totalorder %s19, 0
      %p65 = por %p63, %p64
      %p66 = scmp.ne.s32.totalorder %s55, %s58
      %p67 = scmp.eq.s32.totalorder %s24, 1
      %p68 = por %p66, %p67
      %p69 = scmp.ne.s32.totalorder %s58, %s59
      %p70 = scmp.eq.s32.totalorder %s24, 0
      %p71 = por %p69, %p70
      %p72 = scmp.ne.s32.totalorder %s58, %s59
      %p73 = scmp.eq.s32.totalorder %s25, 1
      %p74 = por %p72, %p73
      %p76 = scmp.ne.s32.totalorder %s59, %s75
      %p77 = scmp.eq.s32.totalorder %s25, 0
      %p78 = por %p76, %p77
      %s80 = sadd.s32 %s79, 1
      %p83 = scmp.eq.s32.totalorder %s19, 1
      %p84 = scmp.ne.s32.totalorder %s79, %s81
      %p85 = scmp.eq.s32.totalorder %s19, 0
      %p86 = por %p84, %p85
      %p87 = scmp.ne.s32.totalorder %s79, %s81
      %p88 = scmp.eq.s32.totalorder %s24, 1
      %p89 = por %p87, %p88
      %p90 = scmp.ne.s32.totalorder %s81, %s82
      %p91 = scmp.eq.s32.totalorder %s24, 0
      %p92 = por %p90, %p91
      %p93 = scmp.ne.s32.totalorder %s81, %s82
      %p94 = scmp.eq.s32.totalorder %s25, 1
      %p95 = por %p93, %p94
      %p97 = scmp.ne.s32.totalorder %s82, %s96
      %p98 = scmp.eq.s32.totalorder %s25, 0
      %p99 = por %p97, %p98
      %s101 = sadd.s32 %s100, 1
      %p104 = scmp.eq.s32.totalorder %s19, 1
      %p105 = scmp.ne.s32.totalorder %s100, %s102
      %p106 = scmp.eq.s32.totalorder %s19, 0
      %p107 = por %p105, %p106
      %p108 = scmp.ne.s32.totalorder %s100, %s102
      %p109 = scmp.eq.s32.totalorder %s24, 1
      %p110 = por %p108, %p109
      %p111 = scmp.ne.s32.totalorder %s102, %s103
      %p112 = scmp.eq.s32.totalorder %s24, 0
      %p113 = por %p111, %p112
      %p114 = scmp.ne.s32.totalorder %s102, %s103
      %p115 = scmp.eq.s32.totalorder %s25, 1
      %p116 = por %p114, %p115
      %p118 = scmp.ne.s32.totalorder %s103, %s117
      %p119 = scmp.eq.s32.totalorder %s25, 0
      %p120 = por %p118, %p119
      %s122 = sadd.s32 %s121, 1
      %p125 = scmp.eq.s32.totalorder %s19, 1
      %p126 = scmp.ne.s32.totalorder %s121, %s123
      %p127 = scmp.eq.s32.totalorder %s19, 0
      %p128 = por %p126, %p127
      %p129 = scmp.ne.s32.totalorder %s121, %s123
      %p130 = scmp.eq.s32.totalorder %s24, 1
      %p131 = por %p129, %p130
      %p132 = scmp.ne.s32.totalorder %s123, %s124
      %p133 = scmp.eq.s32.totalorder %s24, 0
      %p134 = por %p132, %p133
      %p135 = scmp.ne.s32.totalorder %s123, %s124
      %p136 = scmp.eq.s32.totalorder %s25, 1
      %p137 = por %p135, %p136
      %p139 = scmp.ne.s32.totalorder %s124, %s138
      %p140 = scmp.eq.s32.totalorder %s25, 0
      %p141 = por %p139, %p140
      %s143 = sadd.s32 %s142, 1
      %p146 = scmp.eq.s32.totalorder %s19, 1
      %p147 = scmp.ne.s32.totalorder %s142, %s144
      %p148 = scmp.eq.s32.totalorder %s19, 0
      %p149 = por %p147, %p148
      %p150 = scmp.ne.s32.totalorder %s142, %s144
      %p151 = scmp.eq.s32.totalorder %s24, 1
      %p152 = por %p150, %p151
      %p153 = scmp.ne.s32.totalorder %s144, %s145
      %p154 = scmp.eq.s32.totalorder %s24, 0
      %p155 = por %p153, %p154
      %p156 = scmp.ne.s32.totalorder %s144, %s145
      %p157 = scmp.eq.s32.totalorder %s25, 1
      %p158 = por %p156, %p157
      %p160 = scmp.ne.s32.totalorder %s145, %s159
      %p161 = scmp.eq.s32.totalorder %s25, 0
      %p162 = por %p160, %p161
      %s163 = ssub.s32 %s19, %s26
      %p164 = scmp.eq.s32.totalorder %s163, 0
      %s166 = sadd.s32 %s165, 1
      %s167 = scalar_select %p164, %s165, %s166
      %p170 = pneg %p164
      %p171 = scmp.eq.s32.totalorder %s19, 1
      %p172 = por %p170, %p171
      %p173 = scmp.ne.s32.totalorder %s165, %s168
      %p174 = scmp.eq.s32.totalorder %s19, 0
      %p175 = por %p173, %p174
      %p176 = scmp.ne.s32.totalorder %s165, %s168
      %p177 = scmp.eq.s32.totalorder %s24, 1
      %p178 = por %p176, %p177
      %p179 = scmp.ne.s32.totalorder %s168, %s169
      %p180 = scmp.eq.s32.totalorder %s24, 0
      %p181 = por %p179, %p180
      %p182 = scmp.ne.s32.totalorder %s168, %s169
      %p183 = scmp.eq.s32.totalorder %s25, 1
      %p184 = por %p182, %p183
      %p186 = scmp.ne.s32.totalorder %s169, %s185
      %p187 = scmp.eq.s32.totalorder %s25, 0
      %p188 = por %p186, %p187
      %p189 = scmp.le.s32.totalorder 1, %s19
      %p190 = scmp.lt.s32.totalorder %s19, 3
      %p191 = pnand %p189, %p190
      %p192 = pneg %p191
      // Predicated region
      $region9: #{tpu_custom_call.1} parent=5 // pred_check
        _
      $region10: #{tpu_custom_call.1} parent=5 // pred_check_branch
        %194 = sbr.rel (%p191) target = $region12
      $region11: #{tpu_custom_call.1} parent=5 // pred_region
        %s195 = ssub.s32 %s19, 1
        // Predicated region
        $region13: #{tpu_custom_call.1} parent=11 // pred_check
          %p196 = pneg %p92
        $region14: #{tpu_custom_call.1} parent=11 // pred_check_branch
          %198 = sbr.rel (%p196) target = $region16
        $region15: #{tpu_custom_call.1} parent=11 // pred_region
          %200 = vsyncadd [#allocation7], 0
          %s202 = sshll.u32 %s2, 4
          %s203 = int_to_ptr.hbm [resolvable:$true] %s202
          %s204 = sshll.u32 [#allocation6], 4
          %s205 = int_to_ptr.vmem [resolvable:$true] %s204
          %207 = dma.hbm_to_vmem [thread:$0]  %s203, 128, %s205, [#allocation7]
        $region16: #{tpu_custom_call.1} parent=11 // pred_fallthru
          _
        // Predicated region
        $region17: #{tpu_custom_call.1} parent=11 // pred_check
          %p208 = pneg %p113
        $region18: #{tpu_custom_call.1} parent=11 // pred_check_branch
          %210 = sbr.rel (%p208) target = $region20
        $region19: #{tpu_custom_call.1} parent=11 // pred_region
          _
        $region20: #{tpu_custom_call.1} parent=11 // pred_fallthru
          _
        // Predicated region
        $region21: #{tpu_custom_call.1} parent=11 // pred_check
          %p211 = pneg %p134
        $region22: #{tpu_custom_call.1} parent=11 // pred_check_branch
          %213 = sbr.rel (%p211) target = $region24
        $region23: #{tpu_custom_call.1} parent=11 // pred_region
          _
        $region24: #{tpu_custom_call.1} parent=11 // pred_fallthru
          _
        // Predicated region
        $region25: #{tpu_custom_call.1} parent=11 // pred_check
          %p214 = pneg %p155
        $region26: #{tpu_custom_call.1} parent=11 // pred_check_branch
          %216 = sbr.rel (%p214) target = $region28
        $region27: #{tpu_custom_call.1} parent=11 // pred_region
          %218 = vsyncadd [#allocation7], 0
          %s219 = sshll.u32 %s5, 4
          %s220 = int_to_ptr.hbm [resolvable:$true] %s219
          %s221 = sshll.u32 [#allocation8], 4
          %s222 = int_to_ptr.vmem [resolvable:$true] %s221
          %227 = dma.hbm_to_vmem [thread:$0]  %s220, 512, %s222, [#allocation7], 128, 128, 8
        $region28: #{tpu_custom_call.1} parent=11 // pred_fallthru
          _
      $region12: #{tpu_custom_call.1} parent=5 // pred_fallthru
        _
      %p228 = scmp.lt.s32.totalorder %s19, 2
      // Predicated region
      $region29: #{tpu_custom_call.1} parent=5 // pred_check
        %p229 = pneg %p228
      $region30: #{tpu_custom_call.1} parent=5 // pred_check_branch
        %231 = sbr.rel (%p229) target = $region32
      $region31: #{tpu_custom_call.1} parent=5 // pred_region
        // Predicated region
        $region33: #{tpu_custom_call.1} parent=31 // pred_check
          %p232 = pneg %p39
        $region34: #{tpu_custom_call.1} parent=31 // pred_check_branch
          %234 = sbr.rel (%p232) target = $region36
        $region35: #{tpu_custom_call.1} parent=31 // pred_region
          %s235 = sand.u32 %s29, 1
          %s236 = scalar_lea.sflag [#allocation4], %s235
          %s237 = sand.u32 %s29, 1
          %s238 = smul.addr %s237, 8
          %s239 = scalar_lea.vmem [#allocation3], %s238
          %241 = vsyncadd %s236, 0
          %s242 = smul.addr %s19, 8
          %s243 = scalar_lea.hbm %s0, %s242
          %s245 = sshll.u32 %s243, 4
          %s246 = int_to_ptr.hbm [resolvable:$true] %s245
          %s247 = sshll.u32 %s239, 4
          %s248 = int_to_ptr.vmem [resolvable:$true] %s247
          %250 = dma.hbm_to_vmem [thread:$0]  %s246, 128, %s248, %s236
        $region36: #{tpu_custom_call.1} parent=31 // pred_fallthru
          _
        // Predicated region
        $region37: #{tpu_custom_call.1} parent=31 // pred_check
          %p251 = pneg %p65
        $region38: #{tpu_custom_call.1} parent=31 // pred_check_branch
          %253 = sbr.rel (%p251) target = $region40
        $region39: #{tpu_custom_call.1} parent=31 // pred_region
          %p254 = scmp.lt.s32.totalorder %s19, 1
          %s255 = scalar_select %p254, %s19, 1
          %s256 = smul.addr %s255, 2
          %s257 = smul.addr %s256, 8
          %s258 = scalar_lea.vmem %s1, %s257
        $region40: #{tpu_custom_call.1} parent=31 // pred_fallthru
          _
      $region32: #{tpu_custom_call.1} parent=5 // pred_fallthru
        _
      %p259 = scmp.le.s32.totalorder 1, %s19
      %p260 = scmp.lt.s32.totalorder %s19, 3
      %p261 = pnand %p259, %p260
      %p262 = pneg %p261
      // Predicated region
      $region41: #{tpu_custom_call.1} parent=5 // pred_check
        _
      $region42: #{tpu_custom_call.1} parent=5 // pred_check_branch
        %264 = sbr.rel (%p261) target = $region44
      $region43: #{tpu_custom_call.1} parent=5 // pred_region
        %s265 = ssub.s32 %s19, 1
        %s266 = sand.u32 %s32, 1
        %s267 = scalar_lea.sflag [#allocation4], %s266
        %s268 = sand.u32 %s32, 1
        %s269 = smul.addr %s268, 8
        %s270 = scalar_lea.vmem [#allocation3], %s269
        // Predicated region
        $region45: #{tpu_custom_call.1} parent=43 // pred_check
          %p271 = pneg %p45
        $region46: #{tpu_custom_call.1} parent=43 // pred_check_branch
          %273 = sbr.rel (%p271) target = $region48
        $region47: #{tpu_custom_call.1} parent=43 // pred_region
          %275 = dma.done %s267, 128
        $region48: #{tpu_custom_call.1} parent=43 // pred_fallthru
          _
        // Predicated region
        $region49: #{tpu_custom_call.1} parent=43 // pred_check
          %p276 = pneg %p92
        $region50: #{tpu_custom_call.1} parent=43 // pred_check_branch
          %278 = sbr.rel (%p276) target = $region52
        $region51: #{tpu_custom_call.1} parent=43 // pred_region
          %280 = dma.done [#allocation7], 128
        $region52: #{tpu_custom_call.1} parent=43 // pred_fallthru
          _
        // Predicated region
        $region53: #{tpu_custom_call.1} parent=43 // pred_check
          %p281 = pneg %p155
        $region54: #{tpu_custom_call.1} parent=43 // pred_check_branch
          %283 = sbr.rel (%p281) target = $region56
        $region55: #{tpu_custom_call.1} parent=43 // pred_region
          %285 = dma.done [#allocation7], 512
        $region56: #{tpu_custom_call.1} parent=43 // pred_fallthru
          _
        %s286 = sand.u32 %s32, 1
        %s287 = scalar_lea.sflag [#allocation4], %s286
        %s288 = sand.u32 %s32, 1
        %s289 = smul.addr %s288, 8
        %s290 = scalar_lea.vmem [#allocation3], %s289
        %p291 = pneg %p45
        %p292 = pneg %p42
        %p293 = scmp.lt.s32.totalorder %s24, 1
        %s294 = scalar_select %p293, %s24, 1
        %s295 = smul.addr %s294, 2
        %s296 = smul.addr %s295, 8
        %s297 = scalar_lea.vmem %s1, %s296
        %p298 = pneg %p71
        %p299 = pneg %p68
        %p300 = pneg %p92
        %p301 = pneg %p89
        %p302 = pneg %p113
        %p303 = pneg %p110
        %p304 = pneg %p134
        %p305 = pneg %p131
        %p306 = pneg %p155
        %p307 = pneg %p152
        %p308 = pneg %p181
        %p309 = pneg %p178
        %s310 = sand.u32 %s168, 1
        %s311 = scalar_lea.sflag [#allocation5], %s310
        %s312 = sand.u32 %s168, 1
        %s313 = smul.addr %s312, 8
        %s314 = scalar_lea.vmem [#allocation9], %s313
        %p315 = scmp.lt.s32.totalorder %s24, 1
        %s316 = scalar_select %p315, %s24, 1
        %s317 = smul.addr %s316, 2
        %s318 = smul.addr %s317, 8
        %s319 = scalar_lea.vmem %s1, %s318
        %v320 = vld [vmem:[%s270] sm:$0xff]
        %v321 = vld [vmem:[%s319] sm:$0xff]
        %v322 = vld [vmem:[%s319 + $0x8] sm:$0xf]
        %v323 = vld [vmem:[%s3] sm:$0xff]
        %v324 = vld [vmem:[%s3 + $0x8] sm:$0xff]
        %v325 = vld [vmem:[%s3 + $0x10] sm:$0xff]
        %v326 = vld [vmem:[%s3 + $0x18] sm:$0xff]
        %vm327 = vcmask 261120
        %v329 = vsel %vm327, %v320, 0
        %331 = vmatpush.msra.mxu0 0.0
        %332 = vmatpush.msra.mxu0 0.0
        %333 = vmatpush.msra.mxu0 0.0
        %334 = vmatpush.msra.mxu0 0.0
        %335 = vmatpush.msra.mxu0 0.0
        %336 = vmatpush.msra.mxu0 0.0
        %337 = vmatpush.msra.mxu0 0.0
        %338 = vmatpush.msra.mxu0 0.0
        %339 = vmatpush.msra.mxu0 0.0
        %340 = vmatpush.msra.mxu0 0.0
        %341 = vmatpush.msra.mxu0 0.0
        %342 = vmatpush.msra.mxu0 0.0
        %343 = vmatpush.msra.mxu0 %v326
        %344 = vmatpush.msra.mxu0 %v325
        %345 = vmatpush.msra.mxu0 %v324
        %346 = vmatpush.msra.mxu0 %v323
        %347 = vmatmul.f32.gmra.mxu0 %v329
        %v348 = vpop.f32.mrf.mxu0
        %v349 = vadd.f32 0.0, %v348
        %350 = vdwg.mxu0
        %v351 = vld [vmem:[%s4] sm:$0xff]
        %v352 = vld [vmem:[%s4 + $0x8] sm:$0xff]
        %v353 = vld [vmem:[%s4 + $0x10] sm:$0xff]
        %vm354 = vcmask 195584
        %v356 = vsel %vm354, %v321, 0
        %v359 = vsel %vm354, %v322, 0
        %361 = vmatpush.msra.mxu0 0.0
        %362 = vmatpush.msra.mxu0 0.0
        %363 = vmatpush.msra.mxu0 0.0
        %364 = vmatpush.msra.mxu0 0.0
        %365 = vmatpush.msra.mxu0 0.0
        %366 = vmatpush.msra.mxu0 0.0
        %367 = vmatpush.msra.mxu0 0.0
        %368 = vmatpush.msra.mxu0 0.0
        %369 = vmatpush.msra.mxu0 0.0
        %370 = vmatpush.msra.mxu0 0.0
        %371 = vmatpush.msra.mxu0 0.0
        %372 = vmatpush.msra.mxu0 0.0
        %373 = vmatpush.msra.mxu0 0.0
        %374 = vmatpush.msra.mxu0 %v353
        %375 = vmatpush.msra.mxu0 %v352
        %376 = vmatpush.msra.mxu0 %v351
        %377 = vmatmul.f32.gmra.mxu0 %v356
        %v378 = vpop.f32.mrf.mxu0
        %v379 = vadd.f32 0.0, %v378
        %380 = vmatmul.f32.gmra.mxu0 %v359
        %v381 = vpop.f32.mrf.mxu0
        %v382 = vadd.f32 0.0, %v381
        %383 = vdwg.mxu0
        %v384 = vld [vmem:[#allocation6] sm:$0xff]
        %vm385 = vcmask 64512
        %v387 = vsel %vm385, %v349, 0
        %v390 = vsel %vm385, %v379, 0
        %v393 = vsel %vm385, %v382, 0
        %395 = vmatpush.xpose.msra.mxu0 0.0
        %396 = vmatpush.xpose.msra.mxu0 0.0
        %397 = vmatpush.xpose.msra.mxu0 0.0
        %398 = vmatpush.xpose.msra.mxu0 0.0
        %399 = vmatpush.xpose.msra.mxu0 0.0
        %400 = vmatpush.xpose.msra.mxu0 0.0
        %401 = vmatpush.xpose.msra.mxu0 0.0
        %402 = vmatpush.xpose.msra.mxu0 0.0
        %403 = vmatpush.xpose.msra.mxu0 0.0
        %404 = vmatpush.xpose.msra.mxu0 0.0
        %405 = vmatpush.xpose.msra.mxu0 0.0
        %406 = vmatpush.xpose.msra.mxu0 0.0
        %407 = vmatpush.xpose.msra.mxu0 0.0
        %408 = vmatpush.xpose.msra.mxu0 0.0
        %409 = vmatpush.xpose.msra.mxu0 %v393
        %410 = vmatpush.xpose.msra.mxu0 %v390
        %411 = vmatmul.f32.gmra.mxu0 %v387
        %v412 = vpop.f32.mrf.mxu0
        %v413 = vadd.f32 %v384, %v412
        %414 = vdwg.mxu0
        %vm415 = vcmask 97280
        %v416 = vsel %vm415, %v413, -inf
        %417 = vmax.xlane.f32.xlu0 %v416
        %v418 = vpop.xlane.xlu0 %417
        %v419 = vsub.f32 %v413, %v418
        %v420 = vmul.f32 %v419, 1.442695
        %v421 = vpow.pop %v420
        %v422 = vsel %vm415, %v421, 0.0
        %423 = vadd.xlane.f32.xlu0 %v422
        %v424 = vpop.xlane.xlu0 %423
        %v425 = vrcp.pop %v424
        %v426 = vmul.f32 %v424, %v425
        %v427 = vsub.f32 1.0, %v426
        %v428 = vmul.f32 %v425, %v427
        %v429 = vadd.f32 %v425, %v428
        %vm430 = vweird.f32 %v424
        %vm431 = vweird.f32 %v425
        %vm432 = vmor %vm430, %vm431
        %v433 = vsel %vm432, %v425, %v429
        %v434 = vand.u32 2147483647, %v424
        %vm435 = vcmp.eq.f32.partialorder %v434, 8.507059e+37
        %v436 = vand.u32 %v424, 2147483648
        %v437 = vor.u32 1.1754944e-38, %v436
        %v438 = vsel %vm435, %v437, %v433
        %439 = vrot.lane.b32.xlu0 %v379, 96
        %v440 = vpop.permute.xlu0 %439
        %441 = vrot.lane.b32.xlu0 %v382, 96
        %v442 = vpop.permute.xlu0 %441
        %v445 = vsel %vm415, %v421, 0
        %vm447 = vcmask 1043456
        %v448 = vsel %vm447, %v442, 0
        %450 = vmatpush.msra.mxu0 0.0
        %451 = vmatpush.msra.mxu0 0.0
        %452 = vmatpush.msra.mxu0 0.0
        %453 = vmatpush.msra.mxu0 0.0
        %454 = vmatpush.msra.mxu0 0.0
        %455 = vmatpush.msra.mxu0 0.0
        %456 = vmatpush.msra.mxu0 0.0
        %457 = vmatpush.msra.mxu0 0.0
        %458 = vmatpush.msra.mxu0 0.0
        %459 = vmatpush.msra.mxu0 0.0
        %460 = vmatpush.msra.mxu0 0.0
        %461 = vmatpush.msra.mxu0 0.0
        %462 = vmatpush.msra.mxu0 0.0
        %463 = vmatpush.msra.mxu0 0.0
        %464 = vmatpush.msra.mxu0 %v448
        %465 = vmatpush.msra.mxu0 %v440
        %466 = vmatmul.f32.gmra.mxu0 %v445
        %v467 = vpop.f32.mrf.mxu0
        %v468 = vadd.f32 0.0, %v467
        %469 = vdwg.mxu0
        %v470 = vmul.f32 %v468, %v438
        %471 = vst.msk [vmem:[#allocation2] sm:$0xff] %vm385, %v470
        %472 = vrot.lane.b32.xlu0 %v349, 120
        %v473 = vpop.permute.xlu0 %472
        %474 = vrot.lane.b32.xlu0 %v379, 120
        %v475 = vpop.permute.xlu0 %474
        %476 = vrot.lane.b32.xlu0 %v382, 120
        %v477 = vpop.permute.xlu0 %476
        %v478 = vsel %vm385, %v473, 0
        %v480 = vsel %vm385, %v475, 0
        %v482 = vsel %vm385, %v477, 0
        %484 = vmatpush.xpose.msra.mxu0 0.0
        %485 = vmatpush.xpose.msra.mxu0 0.0
        %486 = vmatpush.xpose.msra.mxu0 0.0
        %487 = vmatpush.xpose.msra.mxu0 0.0
        %488 = vmatpush.xpose.msra.mxu0 0.0
        %489 = vmatpush.xpose.msra.mxu0 0.0
        %490 = vmatpush.xpose.msra.mxu0 0.0
        %491 = vmatpush.xpose.msra.mxu0 0.0
        %492 = vmatpush.xpose.msra.mxu0 0.0
        %493 = vmatpush.xpose.msra.mxu0 0.0
        %494 = vmatpush.xpose.msra.mxu0 0.0
        %495 = vmatpush.xpose.msra.mxu0 0.0
        %496 = vmatpush.xpose.msra.mxu0 0.0
        %497 = vmatpush.xpose.msra.mxu0 0.0
        %498 = vmatpush.xpose.msra.mxu0 %v482
        %499 = vmatpush.xpose.msra.mxu0 %v480
        %500 = vmatmul.f32.gmra.mxu0 %v478
        %v501 = vpop.f32.mrf.mxu0
        %v502 = vadd.f32 %v384, %v501
        %503 = vdwg.mxu0
        %v504 = vsel %vm415, %v502, -inf
        %505 = vmax.xlane.f32.xlu0 %v504
        %v506 = vpop.xlane.xlu0 %505
        %v507 = vsub.f32 %v502, %v506
        %v508 = vmul.f32 %v507, 1.442695
        %v509 = vpow.pop %v508
        %v510 = vsel %vm415, %v509, 0.0
        %511 = vadd.xlane.f32.xlu0 %v510
        %v512 = vpop.xlane.xlu0 %511
        %v513 = vrcp.pop %v512
        %v514 = vmul.f32 %v512, %v513
        %v515 = vsub.f32 1.0, %v514
        %v516 = vmul.f32 %v513, %v515
        %v517 = vadd.f32 %v513, %v516
        %vm518 = vweird.f32 %v512
        %vm519 = vweird.f32 %v513
        %vm520 = vmor %vm518, %vm519
        %v521 = vsel %vm520, %v513, %v517
        %v522 = vand.u32 2147483647, %v512
        %vm523 = vcmp.eq.f32.partialorder %v522, 8.507059e+37
        %v524 = vand.u32 %v512, 2147483648
        %v525 = vor.u32 1.1754944e-38, %v524
        %v526 = vsel %vm523, %v525, %v521
        %527 = vrot.lane.b32.xlu0 %v379, 88
        %v528 = vpop.permute.xlu0 %527
        %529 = vrot.lane.b32.xlu0 %v382, 88
        %v530 = vpop.permute.xlu0 %529
        %v533 = vsel %vm415, %v509, 0
        %v535 = vsel %vm447, %v530, 0
        %537 = vmatpush.msra.mxu0 0.0
        %538 = vmatpush.msra.mxu0 0.0
        %539 = vmatpush.msra.mxu0 0.0
        %540 = vmatpush.msra.mxu0 0.0
        %541 = vmatpush.msra.mxu0 0.0
        %542 = vmatpush.msra.mxu0 0.0
        %543 = vmatpush.msra.mxu0 0.0
        %544 = vmatpush.msra.mxu0 0.0
        %545 = vmatpush.msra.mxu0 0.0
        %546 = vmatpush.msra.mxu0 0.0
        %547 = vmatpush.msra.mxu0 0.0
        %548 = vmatpush.msra.mxu0 0.0
        %549 = vmatpush.msra.mxu0 0.0
        %550 = vmatpush.msra.mxu0 0.0
        %551 = vmatpush.msra.mxu0 %v535
        %552 = vmatpush.msra.mxu0 %v528
        %553 = vmatmul.f32.gmra.mxu0 %v533
        %v554 = vpop.f32.mrf.mxu0
        %v555 = vadd.f32 0.0, %v554
        %556 = vdwg.mxu0
        %v557 = vmul.f32 %v555, %v526
        %558 = vst.msk [vmem:[#allocation2 + $0x8] sm:$0xff] %vm385, %v557
        %559 = vrot.lane.b32.xlu0 %v349, 112
        %v560 = vpop.permute.xlu0 %559
        %561 = vrot.lane.b32.xlu0 %v379, 112
        %v562 = vpop.permute.xlu0 %561
        %563 = vrot.lane.b32.xlu0 %v382, 112
        %v564 = vpop.permute.xlu0 %563
        %v565 = vsel %vm385, %v560, 0
        %v567 = vsel %vm385, %v562, 0
        %v569 = vsel %vm385, %v564, 0
        %571 = vmatpush.xpose.msra.mxu0 0.0
        %572 = vmatpush.xpose.msra.mxu0 0.0
        %573 = vmatpush.xpose.msra.mxu0 0.0
        %574 = vmatpush.xpose.msra.mxu0 0.0
        %575 = vmatpush.xpose.msra.mxu0 0.0
        %576 = vmatpush.xpose.msra.mxu0 0.0
        %577 = vmatpush.xpose.msra.mxu0 0.0
        %578 = vmatpush.xpose.msra.mxu0 0.0
        %579 = vmatpush.xpose.msra.mxu0 0.0
        %580 = vmatpush.xpose.msra.mxu0 0.0
        %581 = vmatpush.xpose.msra.mxu0 0.0
        %582 = vmatpush.xpose.msra.mxu0 0.0
        %583 = vmatpush.xpose.msra.mxu0 0.0
        %584 = vmatpush.xpose.msra.mxu0 0.0
        %585 = vmatpush.xpose.msra.mxu0 %v569
        %586 = vmatpush.xpose.msra.mxu0 %v567
        %587 = vmatmul.f32.gmra.mxu0 %v565
        %v588 = vpop.f32.mrf.mxu0
        %v589 = vadd.f32 %v384, %v588
        %590 = vdwg.mxu0
        %v591 = vsel %vm415, %v589, -inf
        %592 = vmax.xlane.f32.xlu0 %v591
        %v593 = vpop.xlane.xlu0 %592
        %v594 = vsub.f32 %v589, %v593
        %v595 = vmul.f32 %v594, 1.442695
        %v596 = vpow.pop %v595
        %v597 = vsel %vm415, %v596, 0.0
        %598 = vadd.xlane.f32.xlu0 %v597
        %v599 = vpop.xlane.xlu0 %598
        %v600 = vrcp.pop %v599
        %v601 = vmul.f32 %v599, %v600
        %v602 = vsub.f32 1.0, %v601
        %v603 = vmul.f32 %v600, %v602
        %v604 = vadd.f32 %v600, %v603
        %vm605 = vweird.f32 %v599
        %vm606 = vweird.f32 %v600
        %vm607 = vmor %vm605, %vm606
        %v608 = vsel %vm607, %v600, %v604
        %v609 = vand.u32 2147483647, %v599
        %vm610 = vcmp.eq.f32.partialorder %v609, 8.507059e+37
        %v611 = vand.u32 %v599, 2147483648
        %v612 = vor.u32 1.1754944e-38, %v611
        %v613 = vsel %vm610, %v612, %v608
        %614 = vrot.lane.b32.xlu0 %v379, 80
        %v615 = vpop.permute.xlu0 %614
        %616 = vrot.lane.b32.xlu0 %v382, 80
        %v617 = vpop.permute.xlu0 %616
        %v620 = vsel %vm415, %v596, 0
        %v622 = vsel %vm447, %v617, 0
        %624 = vmatpush.msra.mxu0 0.0
        %625 = vmatpush.msra.mxu0 0.0
        %626 = vmatpush.msra.mxu0 0.0
        %627 = vmatpush.msra.mxu0 0.0
        %628 = vmatpush.msra.mxu0 0.0
        %629 = vmatpush.msra.mxu0 0.0
        %630 = vmatpush.msra.mxu0 0.0
        %631 = vmatpush.msra.mxu0 0.0
        %632 = vmatpush.msra.mxu0 0.0
        %633 = vmatpush.msra.mxu0 0.0
        %634 = vmatpush.msra.mxu0 0.0
        %635 = vmatpush.msra.mxu0 0.0
        %636 = vmatpush.msra.mxu0 0.0
        %637 = vmatpush.msra.mxu0 0.0
        %638 = vmatpush.msra.mxu0 %v622
        %639 = vmatpush.msra.mxu0 %v615
        %640 = vmatmul.f32.gmra.mxu0 %v620
        %v641 = vpop.f32.mrf.mxu0
        %v642 = vadd.f32 0.0, %v641
        %643 = vdwg.mxu0
        %v644 = vmul.f32 %v642, %v613
        %645 = vst.msk [vmem:[#allocation2 + $0x10] sm:$0xff] %vm385, %v644
        %646 = vrot.lane.b32.xlu0 %v349, 104
        %v647 = vpop.permute.xlu0 %646
        %648 = vrot.lane.b32.xlu0 %v379, 104
        %v649 = vpop.permute.xlu0 %648
        %650 = vrot.lane.b32.xlu0 %v382, 104
        %v651 = vpop.permute.xlu0 %650
        %v652 = vsel %vm385, %v647, 0
        %v654 = vsel %vm385, %v649, 0
        %v656 = vsel %vm385, %v651, 0
        %658 = vmatpush.xpose.msra.mxu0 0.0
        %659 = vmatpush.xpose.msra.mxu0 0.0
        %660 = vmatpush.xpose.msra.mxu0 0.0
        %661 = vmatpush.xpose.msra.mxu0 0.0
        %662 = vmatpush.xpose.msra.mxu0 0.0
        %663 = vmatpush.xpose.msra.mxu0 0.0
        %664 = vmatpush.xpose.msra.mxu0 0.0
        %665 = vmatpush.xpose.msra.mxu0 0.0
        %666 = vmatpush.xpose.msra.mxu0 0.0
        %667 = vmatpush.xpose.msra.mxu0 0.0
        %668 = vmatpush.xpose.msra.mxu0 0.0
        %669 = vmatpush.xpose.msra.mxu0 0.0
        %670 = vmatpush.xpose.msra.mxu0 0.0
        %671 = vmatpush.xpose.msra.mxu0 0.0
        %672 = vmatpush.xpose.msra.mxu0 %v656
        %673 = vmatpush.xpose.msra.mxu0 %v654
        %674 = vmatmul.f32.gmra.mxu0 %v652
        %v675 = vpop.f32.mrf.mxu0
        %v676 = vadd.f32 %v384, %v675
        %677 = vdwg.mxu0
        %v678 = vsel %vm415, %v676, -inf
        %679 = vmax.xlane.f32.xlu0 %v678
        %v680 = vpop.xlane.xlu0 %679
        %v681 = vsub.f32 %v676, %v680
        %v682 = vmul.f32 %v681, 1.442695
        %v683 = vpow.pop %v682
        %v684 = vsel %vm415, %v683, 0.0
        %685 = vadd.xlane.f32.xlu0 %v684
        %v686 = vpop.xlane.xlu0 %685
        %v687 = vrcp.pop %v686
        %v688 = vmul.f32 %v686, %v687
        %v689 = vsub.f32 1.0, %v688
        %v690 = vmul.f32 %v687, %v689
        %v691 = vadd.f32 %v687, %v690
        %vm692 = vweird.f32 %v686
        %vm693 = vweird.f32 %v687
        %vm694 = vmor %vm692, %vm693
        %v695 = vsel %vm694, %v687, %v691
        %v696 = vand.u32 2147483647, %v686
        %vm697 = vcmp.eq.f32.partialorder %v696, 8.507059e+37
        %v698 = vand.u32 %v686, 2147483648
        %v699 = vor.u32 1.1754944e-38, %v698
        %v700 = vsel %vm697, %v699, %v695
        %701 = vrot.lane.b32.xlu0 %v379, 72
        %v702 = vpop.permute.xlu0 %701
        %703 = vrot.lane.b32.xlu0 %v382, 72
        %v704 = vpop.permute.xlu0 %703
        %v707 = vsel %vm415, %v683, 0
        %v709 = vsel %vm447, %v704, 0
        %711 = vmatpush.msra.mxu0 0.0
        %712 = vmatpush.msra.mxu0 0.0
        %713 = vmatpush.msra.mxu0 0.0
        %714 = vmatpush.msra.mxu0 0.0
        %715 = vmatpush.msra.mxu0 0.0
        %716 = vmatpush.msra.mxu0 0.0
        %717 = vmatpush.msra.mxu0 0.0
        %718 = vmatpush.msra.mxu0 0.0
        %719 = vmatpush.msra.mxu0 0.0
        %720 = vmatpush.msra.mxu0 0.0
        %721 = vmatpush.msra.mxu0 0.0
        %722 = vmatpush.msra.mxu0 0.0
        %723 = vmatpush.msra.mxu0 0.0
        %724 = vmatpush.msra.mxu0 0.0
        %725 = vmatpush.msra.mxu0 %v709
        %726 = vmatpush.msra.mxu0 %v702
        %727 = vmatmul.f32.gmra.mxu0 %v707
        %v728 = vpop.f32.mrf.mxu0
        %v729 = vadd.f32 0.0, %v728
        %730 = vdwg.mxu0
        %v731 = vmul.f32 %v729, %v700
        %732 = vst.msk [vmem:[#allocation2 + $0x18] sm:$0xff] %vm385, %v731
        %v733 = vld [vmem:[#allocation8] sm:$0xff]
        %v734 = vld [vmem:[#allocation8 + $0x8] sm:$0xff]
        %v735 = vld [vmem:[#allocation8 + $0x10] sm:$0xff]
        %v736 = vld [vmem:[#allocation8 + $0x18] sm:$0xff]
        %v737 = vld [vmem:[#allocation2] ss:$4 sm:$0xff]
        %s738 = scalar_lea.vmem [#allocation2], 1
        %v739 = vld [vmem:[%s738] ss:$4 sm:$0xff]
        %v741 = vsel %vm385, %v739, 0
        %743 = vmatpush.msra.mxu0 0.0
        %744 = vmatpush.msra.mxu0 0.0
        %745 = vmatpush.msra.mxu0 0.0
        %746 = vmatpush.msra.mxu0 0.0
        %747 = vmatpush.msra.mxu0 0.0
        %748 = vmatpush.msra.mxu0 0.0
        %749 = vmatpush.msra.mxu0 0.0
        %750 = vmatpush.msra.mxu0 0.0
        %751 = vmatpush.msra.mxu0 0.0
        %752 = vmatpush.msra.mxu0 0.0
        %753 = vmatpush.msra.mxu0 0.0
        %754 = vmatpush.msra.mxu0 0.0
        %755 = vmatpush.msra.mxu0 0.0
        %756 = vmatpush.msra.mxu0 0.0
        %757 = vmatpush.msra.mxu0 0.0
        %758 = vmatpush.msra.mxu0 %v734
        %759 = vmatmul.f32.gmra.mxu0 %v741
        %v760 = vpop.f32.mrf.mxu0
        %v761 = vadd.f32 0.0, %v760
        %762 = vdwg.mxu0
        %v764 = vsel %vm385, %v737, 0
        %766 = vmatpush.msra.mxu0 0.0
        %767 = vmatpush.msra.mxu0 0.0
        %768 = vmatpush.msra.mxu0 0.0
        %769 = vmatpush.msra.mxu0 0.0
        %770 = vmatpush.msra.mxu0 0.0
        %771 = vmatpush.msra.mxu0 0.0
        %772 = vmatpush.msra.mxu0 0.0
        %773 = vmatpush.msra.mxu0 0.0
        %774 = vmatpush.msra.mxu0 0.0
        %775 = vmatpush.msra.mxu0 0.0
        %776 = vmatpush.msra.mxu0 0.0
        %777 = vmatpush.msra.mxu0 0.0
        %778 = vmatpush.msra.mxu0 0.0
        %779 = vmatpush.msra.mxu0 0.0
        %780 = vmatpush.msra.mxu0 0.0
        %781 = vmatpush.msra.mxu0 %v733
        %782 = vmatmul.f32.gmra.mxu0 %v764
        %v783 = vpop.f32.mrf.mxu0
        %v784 = vadd.f32 %v761, %v783
        %785 = vdwg.mxu0
        %s786 = scalar_lea.vmem [#allocation2], 2
        %v787 = vld [vmem:[%s786] ss:$4 sm:$0xff]
        %v789 = vsel %vm385, %v787, 0
        %791 = vmatpush.msra.mxu0 0.0
        %792 = vmatpush.msra.mxu0 0.0
        %793 = vmatpush.msra.mxu0 0.0
        %794 = vmatpush.msra.mxu0 0.0
        %795 = vmatpush.msra.mxu0 0.0
        %796 = vmatpush.msra.mxu0 0.0
        %797 = vmatpush.msra.mxu0 0.0
        %798 = vmatpush.msra.mxu0 0.0
        %799 = vmatpush.msra.mxu0 0.0
        %800 = vmatpush.msra.mxu0 0.0
        %801 = vmatpush.msra.mxu0 0.0
        %802 = vmatpush.msra.mxu0 0.0
        %803 = vmatpush.msra.mxu0 0.0
        %804 = vmatpush.msra.mxu0 0.0
        %805 = vmatpush.msra.mxu0 0.0
        %806 = vmatpush.msra.mxu0 %v735
        %807 = vmatmul.f32.gmra.mxu0 %v789
        %v808 = vpop.f32.mrf.mxu0
        %v809 = vadd.f32 0.0, %v808
        %810 = vdwg.mxu0
        %v811 = vadd.f32 %v784, %v809
        %s812 = scalar_lea.vmem [#allocation2], 3
        %v813 = vld [vmem:[%s812] ss:$4 sm:$0xff]
        %v815 = vsel %vm385, %v813, 0
        %817 = vmatpush.msra.mxu0 0.0
        %818 = vmatpush.msra.mxu0 0.0
        %819 = vmatpush.msra.mxu0 0.0
        %820 = vmatpush.msra.mxu0 0.0
        %821 = vmatpush.msra.mxu0 0.0
        %822 = vmatpush.msra.mxu0 0.0
        %823 = vmatpush.msra.mxu0 0.0
        %824 = vmatpush.msra.mxu0 0.0
        %825 = vmatpush.msra.mxu0 0.0
        %826 = vmatpush.msra.mxu0 0.0
        %827 = vmatpush.msra.mxu0 0.0
        %828 = vmatpush.msra.mxu0 0.0
        %829 = vmatpush.msra.mxu0 0.0
        %830 = vmatpush.msra.mxu0 0.0
        %831 = vmatpush.msra.mxu0 0.0
        %832 = vmatpush.msra.mxu0 %v736
        %833 = vmatmul.f32.gmra.mxu0 %v815
        %v834 = vpop.f32.mrf.mxu0
        %v835 = vadd.f32 0.0, %v834
        %836 = vdwg.mxu0
        %v837 = vadd.f32 %v811, %v835
        %838 = vst.msk [vmem:[%s314] sm:$0xff] %vm327, %v837
        %s839 = sand.u32 %s168, 1
        %s840 = scalar_lea.sflag [#allocation5], %s839
        %s841 = sand.u32 %s168, 1
        %s842 = smul.addr %s841, 8
        %s843 = scalar_lea.vmem [#allocation9], %s842
        // Predicated region
        $region57: #{tpu_custom_call.1} parent=43 // pred_check
          %p844 = pneg %p178
        $region58: #{tpu_custom_call.1} parent=43 // pred_check_branch
          %846 = sbr.rel (%p844) target = $region60
        $region59: #{tpu_custom_call.1} parent=43 // pred_region
          %848 = vsyncadd %s840, 0
          %s849 = smul.addr %s24, 8
          %s850 = scalar_lea.hbm %s6, %s849
          %s852 = sshll.u32 %s843, 4
          %s853 = int_to_ptr.vmem [resolvable:$true] %s852
          %s854 = sshll.u32 %s850, 4
          %s855 = int_to_ptr.hbm [resolvable:$true] %s854
          %857 = dma.vmem_to_hbm [thread:$0]  %s853, 128, %s855, %s840
        $region60: #{tpu_custom_call.1} parent=43 // pred_fallthru
          _
      $region44: #{tpu_custom_call.1} parent=5 // pred_fallthru
        _
      %p858 = scmp.le.s32.totalorder 2, %s19
      // Predicated region
      $region61: #{tpu_custom_call.1} parent=5 // pred_check
        %p859 = pneg %p858
      $region62: #{tpu_custom_call.1} parent=5 // pred_check_branch
        %861 = sbr.rel (%p859) target = $region64
      $region63: #{tpu_custom_call.1} parent=5 // pred_region
        %s862 = ssub.s32 %s19, 2
        // Predicated region
        $region65: #{tpu_custom_call.1} parent=63 // pred_check
          %p863 = pneg %p184
        $region66: #{tpu_custom_call.1} parent=63 // pred_check_branch
          %865 = sbr.rel (%p863) target = $region68
        $region67: #{tpu_custom_call.1} parent=63 // pred_region
          %s866 = sand.u32 %s169, 1
          %s867 = scalar_lea.sflag [#allocation5], %s866
          %s868 = sand.u32 %s169, 1
          %s869 = smul.addr %s868, 8
          %s870 = scalar_lea.vmem [#allocation9], %s869
          %872 = dma.done %s867, 128
        $region68: #{tpu_custom_call.1} parent=63 // pred_fallthru
          _
      $region64: #{tpu_custom_call.1} parent=5 // pred_fallthru
        _
    $region6: #{tpu_custom_call.1} parent=1 // loop_footer
      %s23 = sadd.s32 1, %s19
    $region7: #{tpu_custom_call.1} parent=1 // loop_footer_branch
      %18 = sbr.rel target = $region3
    $region8: #{tpu_custom_call.1} parent=1 // loop_exit
      _
    %873 = vsyncpa [#allocation4], 1
    %s874 = scalar_lea.sflag [#allocation4], 1
    %875 = vsyncpa %s874, 1
    %876 = vsyncpa [#allocation7], 1
    %877 = vsyncpa [#allocation5], 1
    %s878 = scalar_lea.sflag [#allocation5], 1
    %879 = vsyncpa %s878, 1

</llo_original>
